<compile_context>
chip_gen: v6e
topology: v6e:2x2x1
jax: 0.10.0
libtpu: 0.0.40
codegen_flags: <defaults>
</compile_context>

<pallas_src>
import jax
import jax.numpy as jnp
import numpy as np
from jax.experimental import pallas as pl
from jax.experimental.pallas import tpu as pltpu


def fm_kernel(embT_ref, vaugT_ref, vsqsumT_ref, b_ref, out_ref):
    # embT_ref:    (n, TILE_B)  f32 VMEM   activation tile (lane-dense batch)
    # vaugT_ref:   (k+1, n)     f32 VMEM   rows 0..k-1 = v^T, row k = w^T
    # vsqsumT_ref: (1, n)       f32 VMEM   row-sums of v*v, transposed
    # b_ref:       (1, 1)       f32 SMEM   linear bias scalar
    # out_ref:     (1, TILE_B)  f32 VMEM   sigmoid(logit) slab
    embT = embT_ref[...]
    k = vaugT_ref.shape[0] - 1

    # One MXU pass: rows [0:k] = (x @ v)^T, row k = (x @ w)^T.
    res = jnp.dot(vaugT_ref[...], embT, preferred_element_type=jnp.float32)    # (k+1, T)
    xv = res[:k, :]                                                            # (k, T)
    linear_part = res[k:k + 1, :] + b_ref[0, 0]                                # (1, T)

    # sum_k (x^2 @ v^2) == x^2 @ (sum_k v^2): a single N=1 matmul.
    sos_total = jnp.dot(vsqsumT_ref[...], embT * embT,
                        preferred_element_type=jnp.float32)                    # (1, T)

    # 0.5 * (sum_k (x@v)^2 - sum_k x^2@v^2); axis-0 is a cheap 8-sublane reduce.
    interaction = 0.5 * (jnp.sum(xv * xv, axis=0, keepdims=True) - sos_total)  # (1, T)

    out_ref[...] = jax.nn.sigmoid(linear_part + interaction)


def fm_forward(X, emb_tables, w, b, v, tile_b=16384):
    """X: (B, num_fields) int32; emb_tables: list of (dim_i, embed_dim) f32;
    w: (n, 1); b: (1, 1); v: (n, k).  Returns sigmoid logits of shape (B, 1)."""
    num_fields = len(emb_tables)

    # Embedding gather + concat (data-dependent glue) done in JAX, built
    # directly in the transposed, lane-dense (n, B) layout the kernel wants.
    all_emb_T = jnp.concatenate(
        [emb_tables[i][X[:, i]].T for i in range(num_fields)], axis=0
    ).astype(jnp.float32)                                                      # (n, B)
    n, B = all_emb_T.shape
    k = v.shape[1]

    # Weight-only prep, hoisted out of the kernel / grid loop.
    v_aug_T = jnp.concatenate([v, w], axis=1).T.astype(jnp.float32)            # (k+1, n)
    v_sq_sum_T = jnp.sum(v * v, axis=1, keepdims=True).T.astype(jnp.float32)   # (1, n)

    # Batch tile along the lane axis: whole batch if it fits, else a multiple
    # of 128 lanes (keeps grid >= 2 whenever B > tile_b, so both v7x TCs work).
    if B <= tile_b:
        tile_b = B
    else:
        tile_b = max(128, (tile_b // 128) * 128)
    grid = (pl.cdiv(B, tile_b),)

    cost = pl.CostEstimate(
        flops=2 * B * n * (k + 2) + B * (3 * k + 6),
        transcendentals=B,                                   # sigmoid exp
        bytes_accessed=(B * n + B) * 4 + ((k + 1) * n + n + 1) * 4,
    )

    out_T = pl.pallas_call(
        fm_kernel,
        out_shape=jax.ShapeDtypeStruct((1, B), jnp.float32),
        grid=grid,
        in_specs=[
            pl.BlockSpec((n, tile_b), lambda i: (0, i)),                       # activation tile
            pl.BlockSpec((k + 1, n), lambda i: (0, 0)),                        # [v|w]^T (resident)
            pl.BlockSpec((1, n), lambda i: (0, 0)),                            # sum_k v^2 (resident)
            pl.BlockSpec((1, 1), lambda i: (0, 0),
                         memory_space=pltpu.MemorySpace.SMEM),                 # bias scalar
        ],
        out_specs=pl.BlockSpec((1, tile_b), lambda i: (0, i)),
        compiler_params=pltpu.CompilerParams(
            dimension_semantics=("parallel",)),
        cost_estimate=cost,
    )(all_emb_T, v_aug_T, v_sq_sum_T, b)

    # (1, B) lane-dense slab -> (B, 1) to match the PyTorch module (pure reshape).
    return out_T.reshape(B, 1)


def fm_reference(X, emb_tables, w, b, v):
    all_emb = jnp.concatenate(
        [emb_tables[i][X[:, i]] for i in range(len(emb_tables))], axis=1
    ).astype(jnp.float32)
    linear_part = all_emb @ w + b[0, 0]
    xv = all_emb @ v
    sosq = (all_emb * all_emb) @ (v * v)
    inter = 0.5 * jnp.sum(xv * xv - sosq, axis=-1, keepdims=True)
    return jax.nn.sigmoid(linear_part + inter)


if __name__ == "__main__":
    # Small, deterministic setup consistent with the module's __init__.
    field_dims = [10, 7, 5, 12]          # 4 fields
    embed_dim = 4
    k = 8
    n = len(field_dims) * embed_dim      # 16

    key = jax.random.PRNGKey(0)
    keys = jax.random.split(key, len(field_dims) + 4)

    # Embedding tables ~ N(0,1) (like torch.nn.Embedding default init).
    emb_tables = [
        jax.random.normal(keys[i], (field_dims[i], embed_dim), dtype=jnp.float32)
        for i in range(len(field_dims))
    ]

    # Linear layer (n -> 1): uniform(-1/sqrt(n), 1/sqrt(n)) like torch default.
    lin_bound = 1.0 / np.sqrt(n)
    w = jax.random.uniform(keys[-4], (n, 1), minval=-lin_bound, maxval=lin_bound,
                           dtype=jnp.float32)
    b = jax.random.uniform(keys[-3], (1, 1), minval=-lin_bound, maxval=lin_bound,
                           dtype=jnp.float32)

    # v: xavier_uniform over (k, n) then transposed -> bound sqrt(6/(n+k)).
    v_bound = np.sqrt(6.0 / (n + k))
    v = jax.random.uniform(keys[-2], (n, k), minval=-v_bound, maxval=v_bound,
                           dtype=jnp.float32)

    def make_X(batch, seed_key):
        subkeys = jax.random.split(seed_key, len(field_dims))
        cols = [jax.random.randint(subkeys[i], (batch, 1), 0, field_dims[i],
                                   dtype=jnp.int32)
                for i in range(len(field_dims))]
        return jnp.concatenate(cols, axis=1)

    # 1) Tiny batch: single full-batch tile path.
    X_small = make_X(8, keys[-1])
    out_small = jax.block_until_ready(fm_forward(X_small, emb_tables, w, b, v))
    ref_small = fm_reference(X_small, emb_tables, w, b, v)
    assert out_small.shape == (8, 1)
    assert np.allclose(np.asarray(out_small), np.asarray(ref_small),
                       rtol=1e-5, atol=1e-5)

    # 2) Multi-tile grid path (tile_b=128 -> 4 grid steps).
    X_big = make_X(512, jax.random.PRNGKey(1))
    out_big = jax.block_until_ready(
        fm_forward(X_big, emb_tables, w, b, v, tile_b=128))
    ref_big = fm_reference(X_big, emb_tables, w, b, v)
    assert out_big.shape == (512, 1)
    assert np.allclose(np.asarray(out_big), np.asarray(ref_big),
                       rtol=1e-5, atol=1e-5)

    print("KERNEL_OK")
</pallas_src>

<mosaic_0001>
module attributes {stable_mosaic.version = 11 : i64} {
  func.func @fm_kernel(%arg0: i32, %arg1: memref<16x8xf32, #tpu.memory_space<vmem>>, %arg2: memref<9x16xf32, #tpu.memory_space<vmem>>, %arg3: memref<1x16xf32, #tpu.memory_space<vmem>>, %arg4: memref<1x1xf32, #tpu.memory_space<smem>>, %arg5: memref<1x8xf32, #tpu.memory_space<vmem>>) attributes {dimension_semantics = [#tpu.dimension_semantics<parallel>], iteration_bounds = array<i64: 1>, scalar_prefetch = 0 : i64, scratch_operands = 0 : i64, tpu.core_type = #tpu.core_type<tc>, window_params = [{transform_indices = @transform_0, window_bounds = array<i64: 16, 8>}, {pipeline_mode = #tpu.pipeline_mode<synchronous>, transform_indices = @transform_1, window_bounds = array<i64: 9, 16>}, {pipeline_mode = #tpu.pipeline_mode<synchronous>, transform_indices = @transform_2, window_bounds = array<i64: 1, 16>}, {transform_indices = @transform_3, window_bounds = array<i64: 1, 1>}, {transform_indices = @transform_4, window_bounds = array<i64: 1, 8>}]} {
    %c0 = arith.constant 0 : index
    %c0_0 = arith.constant 0 : index
    %0 = vector.load %arg1[%c0, %c0_0] : memref<16x8xf32, #tpu.memory_space<vmem>>, vector<16x8xf32>
    %c0_1 = arith.constant 0 : index
    %c0_2 = arith.constant 0 : index
    %1 = vector.load %arg2[%c0_1, %c0_2] : memref<9x16xf32, #tpu.memory_space<vmem>>, vector<9x16xf32>
    %cst = arith.constant dense<0.000000e+00> : vector<9x8xf32>
    %2 = tpu.matmul %1, %0, %cst {dimension_numbers = #tpu.dot_dimension_numbers<[1], [0], [0], [1], [0, 0, 1, 1], [], []>} : vector<9x16xf32>, vector<16x8xf32>, vector<9x8xf32> -> vector<9x8xf32>
    %3 = vector.extract_strided_slice %2 {offsets = [0, 0], sizes = [8, 8], strides = [1, 1]} : vector<9x8xf32> to vector<8x8xf32>
    %4 = vector.extract_strided_slice %2 {offsets = [8, 0], sizes = [1, 8], strides = [1, 1]} : vector<9x8xf32> to vector<1x8xf32>
    %c0_3 = arith.constant 0 : index
    %c0_4 = arith.constant 0 : index
    %5 = memref.load %arg4[%c0_3, %c0_4] : memref<1x1xf32, #tpu.memory_space<smem>>
    %6 = vector.broadcast %5 : f32 to vector<1x8xf32>
    %7 = arith.addf %4, %6 : vector<1x8xf32>
    %c0_5 = arith.constant 0 : index
    %c0_6 = arith.constant 0 : index
    %8 = vector.load %arg3[%c0_5, %c0_6] : memref<1x16xf32, #tpu.memory_space<vmem>>, vector<1x16xf32>
    %9 = arith.mulf %0, %0 : vector<16x8xf32>
    %cst_7 = arith.constant dense<0.000000e+00> : vector<1x8xf32>
    %10 = tpu.matmul %8, %9, %cst_7 {dimension_numbers = #tpu.dot_dimension_numbers<[1], [0], [0], [1], [0, 0, 1, 1], [], []>} : vector<1x16xf32>, vector<16x8xf32>, vector<1x8xf32> -> vector<1x8xf32>
    %11 = arith.mulf %3, %3 : vector<8x8xf32>
    %cst_8 = arith.constant dense<0.000000e+00> : vector<8xf32>
    %12 = vector.multi_reduction <add>, %11, %cst_8 [0] : vector<8x8xf32> to vector<8xf32>
    %13 = vector.shape_cast %12 : vector<8xf32> to vector<1x8xf32>
    %14 = arith.subf %13, %10 : vector<1x8xf32>
    %cst_9 = arith.constant 5.000000e-01 : f32
    %15 = vector.broadcast %cst_9 : f32 to vector<1x8xf32>
    %16 = arith.mulf %15, %14 : vector<1x8xf32>
    %17 = arith.addf %7, %16 : vector<1x8xf32>
    %18 = arith.negf %17 : vector<1x8xf32>
    %19 = math.exp %18 : vector<1x8xf32>
    %cst_10 = arith.constant 1.000000e+00 : f32
    %20 = vector.broadcast %cst_10 : f32 to vector<1x8xf32>
    %21 = arith.addf %20, %19 : vector<1x8xf32>
    %22 = arith.divf %20, %21 : vector<1x8xf32>
    %c0_11 = arith.constant 0 : index
    %c0_12 = arith.constant 0 : index
    %23 = vector.load %arg5[%c0_11, %c0_12] : memref<1x8xf32, #tpu.memory_space<vmem>>, vector<1x8xf32>
    tpu.vector_store %arg5[%c0_11, %c0_12], %22 {strides = array<i32>} : memref<1x8xf32, #tpu.memory_space<vmem>>, vector<1x8xf32>,
    return
  }
  func.func @transform_0(%arg0: i32) -> (i32, i32) {
    %c0_i32 = arith.constant 0 : i32
    %c0_i32_0 = arith.constant 0 : i32
    return %c0_i32, %arg0 : i32, i32
  }
  func.func @transform_1(%arg0: i32) -> (i32, i32) {
    %c0_i32 = arith.constant 0 : i32
    %c0_i32_0 = arith.constant 0 : i32
    %c0_i32_1 = arith.constant 0 : i32
    return %c0_i32, %c0_i32_0 : i32, i32
  }
  func.func @transform_2(%arg0: i32) -> (i32, i32) {
    %c0_i32 = arith.constant 0 : i32
    %c0_i32_0 = arith.constant 0 : i32
    %c0_i32_1 = arith.constant 0 : i32
    return %c0_i32, %c0_i32_0 : i32, i32
  }
  func.func @transform_3(%arg0: i32) -> (i32, i32) {
    %c0_i32 = arith.constant 0 : i32
    %c0_i32_0 = arith.constant 0 : i32
    %c0_i32_1 = arith.constant 0 : i32
    return %c0_i32, %c0_i32_0 : i32, i32
  }
  func.func @transform_4(%arg0: i32) -> (i32, i32) {
    %c0_i32 = arith.constant 0 : i32
    %c0_i32_0 = arith.constant 0 : i32
    return %c0_i32, %arg0 : i32, i32
  }
}

</mosaic_0001>

<llo_original>
// kernel: tpu_custom_call.1
$region0: #{tpu_custom_call.1}
  #allocation0 [shape = 'u32[]', space=smem, size = 0x4, offset = 0x4, fixed_abs, tag = 'smem constant byte address 0x4 - core index']
  #allocation1 [shape = 'u32[144,128]{1,0:T(1,128)}', space=vmem, size = 0x12000, scoped, tag = 'internal scratch']
  #allocation2 [shape = 'f32[1,1]{1,0:T(1,128)S(6)}', space=smem, size = 0x200, scoped, tag = 'scoped memory for tpu_custom_call.1']
  %s0 = inlined_call_operand.vmem [shape: f32[16,8], index: 0, kind: input, shape index: {}]
  %s1 = inlined_call_operand.vmem [shape: f32[9,16], index: 1, kind: input, shape index: {}]
  %s2 = inlined_call_operand.vmem [shape: f32[1,16], index: 2, kind: input, shape index: {}]
  %s3 = inlined_call_operand.<no memory space> [shape: f32[1,1], index: 3, kind: input, shape index: {}]
  %s4 = inlined_call_operand.hbm [shape: f32[1,8], index: 4, kind: output, shape index: {}]
  %s5 = sld [smem:[#allocation0]]
  $region26: #{tpu_custom_call.1} parent=0
    _
  %s7 = ssub.s32 1, %s5
  %s8 = scalar_select 0, %s7, %s5
  %9 = sst [smem:[#allocation2]] %s3
  $region1: #{tpu_custom_call.1} parent=0
    #allocation3 [shape = 'u8[512]{0}', space=vmem, size = 0x400, scoped, tag = 'output window, operand 0, single buffered']
    #allocation4 [shape = 's32[1]{0}', space=sflag, size = 0x4, scoped, tag = 'scoped memory for tpu_custom_call.1']
    %10 = vsyncpa [#allocation4], 0
    // Predicated region
    $region2: #{tpu_custom_call.1} parent=1 // pred_check
      _
    $region3: #{tpu_custom_call.1} parent=1 // pred_check_branch
      %12 = sbr.rel (0) target = $region5
    $region4: #{tpu_custom_call.1} parent=1 // pred_region
      _
    $region5: #{tpu_custom_call.1} parent=1 // pred_fallthru
      _
    // Predicated region
    $region6: #{tpu_custom_call.1} parent=1 // pred_check
      _
    $region7: #{tpu_custom_call.1} parent=1 // pred_check_branch
      %14 = sbr.rel (0) target = $region9
    $region8: #{tpu_custom_call.1} parent=1 // pred_region
      _
    $region9: #{tpu_custom_call.1} parent=1 // pred_fallthru
      _
    // Predicated region
    $region10: #{tpu_custom_call.1} parent=1 // pred_check
      _
    $region11: #{tpu_custom_call.1} parent=1 // pred_check_branch
      %16 = sbr.rel (0) target = $region13
    $region12: #{tpu_custom_call.1} parent=1 // pred_region
      _
    $region13: #{tpu_custom_call.1} parent=1 // pred_fallthru
      _
    // Predicated region
    $region14: #{tpu_custom_call.1} parent=1 // pred_check
      _
    $region15: #{tpu_custom_call.1} parent=1 // pred_check_branch
      %18 = sbr.rel (0) target = $region17
    $region16: #{tpu_custom_call.1} parent=1 // pred_region
      _
    $region17: #{tpu_custom_call.1} parent=1 // pred_fallthru
      _
    %v19 = vld [vmem:[%s0] sm:$0xff]
    %v20 = vld [vmem:[%s0 + $0x8] sm:$0xff]
    %v21 = vld [vmem:[%s1] sm:$0xff]
    %v22 = vld [vmem:[%s1 + $0x8] sm:$0x1]
    %vm23 = vcmask 130048
    %v25 = vsel %vm23, %v21, 0
    %v28 = vsel %vm23, %v22, 0
    %30 = vmatprep.subr.mxu0 0.0
    %31 = vmatpush1.msra.mxu0 0.0
    %32 = vmatprep.subr.mxu0 0.0
    %33 = vmatpush1.msra.mxu0 0.0
    %34 = vmatprep.subr.mxu0 0.0
    %35 = vmatpush1.msra.mxu0 0.0
    %36 = vmatprep.subr.mxu0 0.0
    %37 = vmatpush1.msra.mxu0 0.0
    %38 = vmatprep.subr.mxu0 0.0
    %39 = vmatpush1.msra.mxu0 0.0
    %40 = vmatprep.subr.mxu0 0.0
    %41 = vmatpush1.msra.mxu0 0.0
    %42 = vmatprep.subr.mxu0 0.0
    %43 = vmatpush1.msra.mxu0 0.0
    %44 = vmatprep.subr.mxu0 0.0
    %45 = vmatpush1.msra.mxu0 0.0
    %46 = vmatprep.subr.mxu0 0.0
    %47 = vmatpush1.msra.mxu0 0.0
    %48 = vmatprep.subr.mxu0 0.0
    %49 = vmatpush1.msra.mxu0 0.0
    %50 = vmatprep.subr.mxu0 0.0
    %51 = vmatpush1.msra.mxu0 0.0
    %52 = vmatprep.subr.mxu0 0.0
    %53 = vmatpush1.msra.mxu0 0.0
    %54 = vmatprep.subr.mxu0 0.0
    %55 = vmatpush1.msra.mxu0 0.0
    %56 = vmatprep.subr.mxu0 0.0
    %57 = vmatpush1.msra.mxu0 0.0
    %58 = vmatprep.subr.mxu0 0.0
    %59 = vmatpush1.msra.mxu0 %v20
    %60 = vmatprep.subr.mxu0 0.0
    %61 = vmatpush1.msra.mxu0 %v19
    %62 = vmatprep.subr.mxu0 0.0
    %63 = vmatpush2.msra.mxu0 0.0
    %64 = vmatprep.subr.mxu0 0.0
    %65 = vmatpush2.msra.mxu0 0.0
    %66 = vmatprep.subr.mxu0 0.0
    %67 = vmatpush2.msra.mxu0 0.0
    %68 = vmatprep.subr.mxu0 0.0
    %69 = vmatpush2.msra.mxu0 0.0
    %70 = vmatprep.subr.mxu0 0.0
    %71 = vmatpush2.msra.mxu0 0.0
    %72 = vmatprep.subr.mxu0 0.0
    %73 = vmatpush2.msra.mxu0 0.0
    %74 = vmatprep.subr.mxu0 0.0
    %75 = vmatpush2.msra.mxu0 0.0
    %76 = vmatprep.subr.mxu0 0.0
    %77 = vmatpush2.msra.mxu0 0.0
    %78 = vmatprep.subr.mxu0 0.0
    %79 = vmatpush2.msra.mxu0 0.0
    %80 = vmatprep.subr.mxu0 0.0
    %81 = vmatpush2.msra.mxu0 0.0
    %82 = vmatprep.subr.mxu0 0.0
    %83 = vmatpush2.msra.mxu0 0.0
    %84 = vmatprep.subr.mxu0 0.0
    %85 = vmatpush2.msra.mxu0 0.0
    %86 = vmatprep.subr.mxu0 0.0
    %87 = vmatpush2.msra.mxu0 0.0
    %88 = vmatprep.subr.mxu0 0.0
    %89 = vmatpush2.msra.mxu0 0.0
    %90 = vmatprep.subr.mxu0 0.0
    %91 = vmatpush2.msra.mxu0 0.0
    %92 = vmatprep.subr.mxu0 0.0
    %93 = vmatpush2.msra.mxu0 0.0
    %94 = vmatprep.mubr.f32.mxu0 0.0
    %95 = vmatmul.mubr.f32.gmra.mxu0 %v25
    %v96 = vpop.f32.mrf.mxu0
    %v97 = vadd.f32 0.0, %v96
    %v98 = vpop.f32.mrf.mxu0
    %99 = vmatprep.mubr.f32.mxu0 0.0
    %100 = vmatmul.mubr.f32.gmra.mxu0 %v28
    %v101 = vpop.f32.mrf.mxu0
    %v102 = vadd.f32 0.0, %v101
    %v103 = vpop.f32.mrf.mxu0
    %104 = vdwg.mxu0
    %s105 = sld [smem:[#allocation2]]
    %v106 = vstv %s105
    %v107 = vadd.f32 %v102, %v106
    %v108 = vld [vmem:[%s2] sm:$0x1]
    %v109 = vmul.f32 %v19, %v19
    %v110 = vmul.f32 %v20, %v20
    %v112 = vsel %vm23, %v108, 0
    %114 = vmatprep.subr.mxu0 0.0
    %115 = vmatpush1.msra.mxu0 0.0
    %116 = vmatprep.subr.mxu0 0.0
    %117 = vmatpush1.msra.mxu0 0.0
    %118 = vmatprep.subr.mxu0 0.0
    %119 = vmatpush1.msra.mxu0 0.0
    %120 = vmatprep.subr.mxu0 0.0
    %121 = vmatpush1.msra.mxu0 0.0
    %122 = vmatprep.subr.mxu0 0.0
    %123 = vmatpush1.msra.mxu0 0.0
    %124 = vmatprep.subr.mxu0 0.0
    %125 = vmatpush1.msra.mxu0 0.0
    %126 = vmatprep.subr.mxu0 0.0
    %127 = vmatpush1.msra.mxu0 0.0
    %128 = vmatprep.subr.mxu0 0.0
    %129 = vmatpush1.msra.mxu0 0.0
    %130 = vmatprep.subr.mxu0 0.0
    %131 = vmatpush1.msra.mxu0 0.0
    %132 = vmatprep.subr.mxu0 0.0
    %133 = vmatpush1.msra.mxu0 0.0
    %134 = vmatprep.subr.mxu0 0.0
    %135 = vmatpush1.msra.mxu0 0.0
    %136 = vmatprep.subr.mxu0 0.0
    %137 = vmatpush1.msra.mxu0 0.0
    %138 = vmatprep.subr.mxu0 0.0
    %139 = vmatpush1.msra.mxu0 0.0
    %140 = vmatprep.subr.mxu0 0.0
    %141 = vmatpush1.msra.mxu0 0.0
    %142 = vmatprep.subr.mxu0 0.0
    %143 = vmatpush1.msra.mxu0 %v110
    %144 = vmatprep.subr.mxu0 0.0
    %145 = vmatpush1.msra.mxu0 %v109
    %146 = vmatprep.subr.mxu0 0.0
    %147 = vmatpush2.msra.mxu0 0.0
    %148 = vmatprep.subr.mxu0 0.0
    %149 = vmatpush2.msra.mxu0 0.0
    %150 = vmatprep.subr.mxu0 0.0
    %151 = vmatpush2.msra.mxu0 0.0
    %152 = vmatprep.subr.mxu0 0.0
    %153 = vmatpush2.msra.mxu0 0.0
    %154 = vmatprep.subr.mxu0 0.0
    %155 = vmatpush2.msra.mxu0 0.0
    %156 = vmatprep.subr.mxu0 0.0
    %157 = vmatpush2.msra.mxu0 0.0
    %158 = vmatprep.subr.mxu0 0.0
    %159 = vmatpush2.msra.mxu0 0.0
    %160 = vmatprep.subr.mxu0 0.0
    %161 = vmatpush2.msra.mxu0 0.0
    %162 = vmatprep.subr.mxu0 0.0
    %163 = vmatpush2.msra.mxu0 0.0
    %164 = vmatprep.subr.mxu0 0.0
    %165 = vmatpush2.msra.mxu0 0.0
    %166 = vmatprep.subr.mxu0 0.0
    %167 = vmatpush2.msra.mxu0 0.0
    %168 = vmatprep.subr.mxu0 0.0
    %169 = vmatpush2.msra.mxu0 0.0
    %170 = vmatprep.subr.mxu0 0.0
    %171 = vmatpush2.msra.mxu0 0.0
    %172 = vmatprep.subr.mxu0 0.0
    %173 = vmatpush2.msra.mxu0 0.0
    %174 = vmatprep.subr.mxu0 0.0
    %175 = vmatpush2.msra.mxu0 0.0
    %176 = vmatprep.subr.mxu0 0.0
    %177 = vmatpush2.msra.mxu0 0.0
    %178 = vmatprep.mubr.f32.mxu0 0.0
    %179 = vmatmul.mubr.f32.gmra.mxu0 %v112
    %v180 = vpop.f32.mrf.mxu0
    %v181 = vadd.f32 0.0, %v180
    %v182 = vpop.f32.mrf.mxu0
    %183 = vdwg.mxu0
    %v184 = vmul.f32 %v97, %v97
    %vm185 = vcmask 64512
    %v186 = vsel %vm185, %v184, 0.0
    %v187 = vrot.slane %v186, 4
    %v188 = vadd.f32 %v186, %v187
    %v189 = vrot.slane %v188, 2
    %v190 = vadd.f32 %v188, %v189
    %v191 = vrot.slane %v190, 1
    %v192 = vadd.f32 %v190, %v191
    %v193 = vsub.f32 %v192, %v181
    %v194 = vmul.f32 %v193, 0.5
    %v195 = vadd.f32 %v107, %v194
    %v196 = vxor.u32 %v195, 2147483648
    %v197 = vmul.f32 %v196, 1.442695
    %v198 = vpow.pop %v197
    %v199 = vadd.f32 %v198, 1.0
    %v200 = vrcp.pop %v199
    %v201 = vmul.f32 1.0, %v200
    %vm202 = vcmask 57344
    %203 = vst.msk [vmem:[#allocation3] sm:$0x1] %vm202, %v201
    // Predicated region
    $region18: #{tpu_custom_call.1} parent=1 // pred_check
      _
    $region19: #{tpu_custom_call.1} parent=1 // pred_check_branch
      %205 = sbr.rel (0) target = $region21
    $region20: #{tpu_custom_call.1} parent=1 // pred_region
      %s207 = ssub.s32 16, 16
      %208 = vsyncadd [#allocation4], %s207
      %s210 = sshll.u32 [#allocation3], 4
      %s211 = int_to_ptr.vmem [resolvable:$true] %s210
      %213 = dma.vmem_to_hbm [thread:$0]  %s211, 16, %s4, [#allocation4]
    $region21: #{tpu_custom_call.1} parent=1 // pred_fallthru
      _
    // Predicated region
    $region22: #{tpu_custom_call.1} parent=1 // pred_check
      _
    $region23: #{tpu_custom_call.1} parent=1 // pred_check_branch
      %215 = sbr.rel (0) target = $region25
    $region24: #{tpu_custom_call.1} parent=1 // pred_region
      %216 = dma.done [#allocation4], 16
    $region25: #{tpu_custom_call.1} parent=1 // pred_fallthru
      _
    %217 = vsyncpa [#allocation4], 1

</llo_original>
